<compile_context>
chip_gen: v7x
topology: tpu7x:2x2x1
jax: 0.10.0
libtpu: 0.0.40
codegen_flags: <defaults>
</compile_context>

<pallas_src>
import functools

import jax
import jax.numpy as jnp
import numpy as np
from jax.experimental import pallas as pl
from jax.experimental.pallas import tpu as pltpu


def _median_lve_kernel(pred_i_ref, targ_i_ref, pred_j_ref, targ_j_ref,
                       out_ref, cnt_less_ref, cnt_leq_ref, *, k, use_mxu):
    j = pl.program_id(1)

    @pl.when(j == 0)
    def _init():
        cnt_less_ref[...] = jnp.zeros_like(cnt_less_ref)
        cnt_leq_ref[...] = jnp.zeros_like(cnt_leq_ref)

    # Tiles hold only the last (<=128-wide) time slab, native dtype through DMA.
    p_i = pred_i_ref[...]
    t_i = targ_i_ref[...]
    p_j = pred_j_ref[...]
    t_j = targ_j_ref[...]

    # Last column of every tile is the last time step of the full sequence.
    d_i = jnp.abs(p_i[:, -1:].astype(jnp.float32)
                  - t_i[:, -1:].astype(jnp.float32))            # (TI, 1)
    d_j = jnp.abs(p_j[:, -1:].astype(jnp.float32)
                  - t_j[:, -1:].astype(jnp.float32))            # (TJ, 1)
    d_j_row = jnp.transpose(d_j)                                # (1, TJ) lane-dense

    less = (d_j_row < d_i).astype(jnp.float32)                  # (TI, TJ)
    leq = (d_j_row <= d_i).astype(jnp.float32)                  # (TI, TJ)

    if use_mxu:
        # MXU reduce (frees the XLU lane-reduce slot); f32 acc keeps counts exact.
        ones = jnp.ones((less.shape[1], 1), jnp.float32)
        cnt_less_ref[...] += jnp.dot(less, ones, preferred_element_type=jnp.float32)
        cnt_leq_ref[...] += jnp.dot(leq, ones, preferred_element_type=jnp.float32)
    else:
        cnt_less_ref[...] += jnp.sum(less, axis=-1, keepdims=True)
        cnt_leq_ref[...] += jnp.sum(leq, axis=-1, keepdims=True)

    @pl.when(j == pl.num_programs(1) - 1)
    def _finalize():
        kf = jnp.float32(k)                                     # lower-median rank
        is_med = jnp.logical_and(cnt_less_ref[...] <= kf, cnt_leq_ref[...] > kf)
        # Every candidate in this i-tile equals the median; padded / non-candidate
        # rows contribute -inf.  Wrapper takes max over the per-i-tile partials.
        out_ref[...] = jnp.max(jnp.where(is_med, d_i, -jnp.inf),
                               axis=0, keepdims=True)           # (1, 1)


def median_last_value_error(predictions: jnp.ndarray, targets: jnp.ndarray,
                            *, tile_b: int = 256):
    """JAX/Pallas equivalent of MedianLastValueError.forward for [B, T] inputs."""
    assert predictions.shape == targets.shape
    assert predictions.ndim == 2
    B, T = predictions.shape
    assert B < (1 << 24), "float32 rank counts are exact only for B < 2^24"

    k = (B - 1) // 2  # lower-median rank, from the *real* batch size

    # ---- time axis: DMA only the last <=128-wide lane tile ---------------
    if T >= 128:
        if T % 128 == 0:
            w, last_blk = 128, T // 128 - 1          # last-tile BlockSpec, no copy
        else:
            # Pre-slice the last 128 columns: one tiny aligned XLA copy; keeps
            # HBM traffic at B*128 elements instead of the old full-(B,T) DMA.
            predictions = jax.lax.slice(predictions, (0, T - 128), (B, T))
            targets = jax.lax.slice(targets, (0, T - 128), (B, T))
            w, last_blk = 128, 0
    else:
        w, last_blk = T, 0                           # full (tiny) time axis

    # ---- batch axis tiling for the O(B^2) rank count ----------------------
    if B <= tile_b:
        tb = B                                       # single tile == full dims
        b_pad = B
    else:
        tb = tile_b
        b_pad = pl.cdiv(B, tb) * tb
        if b_pad != B:
            # Padded rows get distance +inf: never a median candidate and they
            # do not change the rank counts of real rows.
            cur_t = predictions.shape[1]
            pad_p = jnp.full((b_pad - B, cur_t), jnp.inf, predictions.dtype)
            pad_t = jnp.zeros((b_pad - B, cur_t), targets.dtype)
            predictions = jnp.concatenate([predictions, pad_p], axis=0)
            targets = jnp.concatenate([targets, pad_t], axis=0)

    ni = nj = b_pad // tb
    use_mxu = tb >= 128                              # MXU reduce only for big tiles

    spec_i = pl.BlockSpec((tb, w), lambda i, j: (i, last_blk))
    spec_j = pl.BlockSpec((tb, w), lambda i, j: (j, last_blk))

    partials = pl.pallas_call(
        functools.partial(_median_lve_kernel, k=k, use_mxu=use_mxu),
        out_shape=jax.ShapeDtypeStruct((ni, 1, 1), jnp.float32),
        grid_spec=pltpu.PrefetchScalarGridSpec(
            num_scalar_prefetch=0,
            grid=(ni, nj),
            in_specs=[spec_i, spec_i, spec_j, spec_j],
            out_specs=pl.BlockSpec((None, 1, 1), lambda i, j: (i, 0, 0)),
            scratch_shapes=[pltpu.VMEM((tb, 1), jnp.float32),
                            pltpu.VMEM((tb, 1), jnp.float32)],
        ),
        compiler_params=pltpu.CompilerParams(
            dimension_semantics=("parallel", "arbitrary")),
    )(predictions, targets, predictions, targets)

    return jnp.max(partials)


def _reference_median_lve(predictions, targets):
    p = np.asarray(jnp.asarray(predictions, jnp.float32))
    t = np.asarray(jnp.asarray(targets, jnp.float32))
    d = np.abs(p[:, -1] - t[:, -1])
    return np.sort(d)[(d.size - 1) // 2]


if __name__ == "__main__":
    key = jax.random.PRNGKey(0)

    # Case 1: small T (< 128), even batch, float32, single-tile path.
    key, kp, kt = jax.random.split(key, 3)
    B1, T1 = 8, 16
    p1 = jax.random.normal(kp, (B1, T1), dtype=jnp.float32)
    t1 = jax.random.normal(kt, (B1, T1), dtype=jnp.float32)
    r1 = jax.block_until_ready(median_last_value_error(p1, t1))
    np.testing.assert_allclose(
        float(r1), float(_reference_median_lve(p1, t1)), rtol=1e-6, atol=1e-6
    )

    # Case 2: T multiple of 128 (last-tile BlockSpec, no copy), odd batch, bf16.
    key, kp, kt = jax.random.split(key, 3)
    B2, T2 = 7, 256
    p2 = jax.random.normal(kp, (B2, T2), dtype=jnp.float32).astype(jnp.bfloat16)
    t2 = jax.random.normal(kt, (B2, T2), dtype=jnp.float32).astype(jnp.bfloat16)
    r2 = jax.block_until_ready(median_last_value_error(p2, t2))
    np.testing.assert_allclose(
        float(r2), float(_reference_median_lve(p2, t2)), rtol=1e-6, atol=1e-6
    )

    # Case 3: T not a multiple of 128 (pre-slice path), B > tile_b with padding,
    # 2x2 grid (parallel i, reduction j) and MXU rank-count reduce.
    key, kp, kt = jax.random.split(key, 3)
    B3, T3 = 384, 200
    p3 = jax.random.normal(kp, (B3, T3), dtype=jnp.float32)
    t3 = jax.random.normal(kt, (B3, T3), dtype=jnp.float32)
    r3 = jax.block_until_ready(median_last_value_error(p3, t3, tile_b=256))
    np.testing.assert_allclose(
        float(r3), float(_reference_median_lve(p3, t3)), rtol=1e-6, atol=1e-6
    )

    print("KERNEL_OK")
</pallas_src>

<mosaic_0001>
module attributes {stable_mosaic.version = 11 : i64} {
  func.func @_median_lve_kernel(%arg0: i32, %arg1: i32, %arg2: memref<8x16xf32, #tpu.memory_space<vmem>>, %arg3: memref<8x16xf32, #tpu.memory_space<vmem>>, %arg4: memref<8x16xf32, #tpu.memory_space<vmem>>, %arg5: memref<8x16xf32, #tpu.memory_space<vmem>>, %arg6: memref<1x1x1xf32, #tpu.memory_space<vmem>>, %arg7: memref<8x1xf32, #tpu.memory_space<vmem>>, %arg8: memref<8x1xf32, #tpu.memory_space<vmem>>) attributes {dimension_semantics = [#tpu.dimension_semantics<parallel>, #tpu.dimension_semantics<arbitrary>], iteration_bounds = array<i64: 1, 1>, scalar_prefetch = 0 : i64, scratch_operands = 2 : i64, tpu.core_type = #tpu.core_type<tc>, window_params = [{transform_indices = @transform_0, window_bounds = array<i64: 8, 16>}, {transform_indices = @transform_1, window_bounds = array<i64: 8, 16>}, {transform_indices = @transform_2, window_bounds = array<i64: 8, 16>}, {transform_indices = @transform_3, window_bounds = array<i64: 8, 16>}, {transform_indices = @transform_4, window_bounds = array<i64: 1, 1, 1>}]} {
    %c0_i32 = arith.constant 0 : i32
    %0 = arith.cmpi eq, %arg1, %c0_i32 : i32
    %1 = arith.extui %0 : i1 to i32
    %c0_i32_0 = arith.constant 0 : i32
    %2 = arith.cmpi ne, %1, %c0_i32_0 : i32
    scf.if %2 {
      %cst_19 = arith.constant 0.000000e+00 : f32
      %39 = vector.broadcast %cst_19 : f32 to vector<8x1xf32>
      %c0_20 = arith.constant 0 : index
      %c0_21 = arith.constant 0 : index
      %40 = vector.load %arg7[%c0_20, %c0_21] : memref<8x1xf32, #tpu.memory_space<vmem>>, vector<8x1xf32>
      tpu.vector_store %arg7[%c0_20, %c0_21], %39 {strides = array<i32>} : memref<8x1xf32, #tpu.memory_space<vmem>>, vector<8x1xf32>,
      %cst_22 = arith.constant 0.000000e+00 : f32
      %41 = vector.broadcast %cst_22 : f32 to vector<8x1xf32>
      %c0_23 = arith.constant 0 : index
      %c0_24 = arith.constant 0 : index
      %42 = vector.load %arg8[%c0_23, %c0_24] : memref<8x1xf32, #tpu.memory_space<vmem>>, vector<8x1xf32>
      tpu.vector_store %arg8[%c0_23, %c0_24], %41 {strides = array<i32>} : memref<8x1xf32, #tpu.memory_space<vmem>>, vector<8x1xf32>,
    } else {
    }
    %c0 = arith.constant 0 : index
    %c0_1 = arith.constant 0 : index
    %3 = vector.load %arg2[%c0, %c0_1] : memref<8x16xf32, #tpu.memory_space<vmem>>, vector<8x16xf32>
    %c0_2 = arith.constant 0 : index
    %c0_3 = arith.constant 0 : index
    %4 = vector.load %arg3[%c0_2, %c0_3] : memref<8x16xf32, #tpu.memory_space<vmem>>, vector<8x16xf32>
    %c0_4 = arith.constant 0 : index
    %c0_5 = arith.constant 0 : index
    %5 = vector.load %arg4[%c0_4, %c0_5] : memref<8x16xf32, #tpu.memory_space<vmem>>, vector<8x16xf32>
    %c0_6 = arith.constant 0 : index
    %c0_7 = arith.constant 0 : index
    %6 = vector.load %arg5[%c0_6, %c0_7] : memref<8x16xf32, #tpu.memory_space<vmem>>, vector<8x16xf32>
    %7 = vector.extract_strided_slice %3 {offsets = [0, 15], sizes = [8, 1], strides = [1, 1]} : vector<8x16xf32> to vector<8x1xf32>
    %8 = vector.extract_strided_slice %4 {offsets = [0, 15], sizes = [8, 1], strides = [1, 1]} : vector<8x16xf32> to vector<8x1xf32>
    %9 = arith.subf %7, %8 : vector<8x1xf32>
    %10 = math.absf %9 : vector<8x1xf32>
    %11 = vector.extract_strided_slice %5 {offsets = [0, 15], sizes = [8, 1], strides = [1, 1]} : vector<8x16xf32> to vector<8x1xf32>
    %12 = vector.extract_strided_slice %6 {offsets = [0, 15], sizes = [8, 1], strides = [1, 1]} : vector<8x16xf32> to vector<8x1xf32>
    %13 = arith.subf %11, %12 : vector<8x1xf32>
    %14 = math.absf %13 : vector<8x1xf32>
    %15 = tpu.transpose %14, [1, 0] : vector<8x1xf32> -> vector<1x8xf32>
    %16 = vector.broadcast %15 : vector<1x8xf32> to vector<8x8xf32>
    %17 = vector.broadcast %10 : vector<8x1xf32> to vector<8x8xf32>
    %18 = arith.cmpf olt, %16, %17 : vector<8x8xf32>
    %19 = arith.extui %18 : vector<8x8xi1> to vector<8x8xi32>
    %20 = arith.sitofp %19 : vector<8x8xi32> to vector<8x8xf32>
    %21 = vector.broadcast %15 : vector<1x8xf32> to vector<8x8xf32>
    %22 = vector.broadcast %10 : vector<8x1xf32> to vector<8x8xf32>
    %23 = arith.cmpf ole, %21, %22 : vector<8x8xf32>
    %24 = arith.extui %23 : vector<8x8xi1> to vector<8x8xi32>
    %25 = arith.sitofp %24 : vector<8x8xi32> to vector<8x8xf32>
    %c0_8 = arith.constant 0 : index
    %c0_9 = arith.constant 0 : index
    %26 = vector.load %arg7[%c0_8, %c0_9] : memref<8x1xf32, #tpu.memory_space<vmem>>, vector<8x1xf32>
    %cst = arith.constant dense<0.000000e+00> : vector<8xf32>
    %27 = vector.multi_reduction <add>, %20, %cst [1] : vector<8x8xf32> to vector<8xf32>
    %28 = vector.shape_cast %27 : vector<8xf32> to vector<8x1xf32>
    %29 = arith.addf %26, %28 : vector<8x1xf32>
    %c0_10 = arith.constant 0 : index
    %c0_11 = arith.constant 0 : index
    %30 = vector.load %arg7[%c0_10, %c0_11] : memref<8x1xf32, #tpu.memory_space<vmem>>, vector<8x1xf32>
    tpu.vector_store %arg7[%c0_10, %c0_11], %29 {strides = array<i32>} : memref<8x1xf32, #tpu.memory_space<vmem>>, vector<8x1xf32>,
    %c0_12 = arith.constant 0 : index
    %c0_13 = arith.constant 0 : index
    %31 = vector.load %arg8[%c0_12, %c0_13] : memref<8x1xf32, #tpu.memory_space<vmem>>, vector<8x1xf32>
    %cst_14 = arith.constant dense<0.000000e+00> : vector<8xf32>
    %32 = vector.multi_reduction <add>, %25, %cst_14 [1] : vector<8x8xf32> to vector<8xf32>
    %33 = vector.shape_cast %32 : vector<8xf32> to vector<8x1xf32>
    %34 = arith.addf %31, %33 : vector<8x1xf32>
    %c0_15 = arith.constant 0 : index
    %c0_16 = arith.constant 0 : index
    %35 = vector.load %arg8[%c0_15, %c0_16] : memref<8x1xf32, #tpu.memory_space<vmem>>, vector<8x1xf32>
    tpu.vector_store %arg8[%c0_15, %c0_16], %34 {strides = array<i32>} : memref<8x1xf32, #tpu.memory_space<vmem>>, vector<8x1xf32>,
    %c0_i32_17 = arith.constant 0 : i32
    %36 = arith.cmpi eq, %arg1, %c0_i32_17 : i32
    %37 = arith.extui %36 : i1 to i32
    %c0_i32_18 = arith.constant 0 : i32
    %38 = arith.cmpi ne, %37, %c0_i32_18 : i32
    scf.if %38 {
      %c0_19 = arith.constant 0 : index
      %c0_20 = arith.constant 0 : index
      %39 = vector.load %arg7[%c0_19, %c0_20] : memref<8x1xf32, #tpu.memory_space<vmem>>, vector<8x1xf32>
      %cst_21 = arith.constant 3.000000e+00 : f32
      %40 = vector.broadcast %cst_21 : f32 to vector<8x1xf32>
      %41 = arith.cmpf ole, %39, %40 : vector<8x1xf32>
      %c0_22 = arith.constant 0 : index
      %c0_23 = arith.constant 0 : index
      %42 = vector.load %arg8[%c0_22, %c0_23] : memref<8x1xf32, #tpu.memory_space<vmem>>, vector<8x1xf32>
      %cst_24 = arith.constant 3.000000e+00 : f32
      %43 = vector.broadcast %cst_24 : f32 to vector<8x1xf32>
      %44 = arith.cmpf ogt, %42, %43 : vector<8x1xf32>
      %45 = arith.andi %41, %44 : vector<8x1xi1>
      %cst_25 = arith.constant 0xFF800000 : f32
      %46 = vector.broadcast %cst_25 : f32 to vector<8x1xf32>
      %47 = arith.select %45, %10, %46 : vector<8x1xi1>, vector<8x1xf32>
      %cst_26 = arith.constant dense<0xFF800000> : vector<1xf32>
      %48 = vector.multi_reduction <maximumf>, %47, %cst_26 [0] : vector<8x1xf32> to vector<1xf32>
      %49 = vector.shape_cast %48 : vector<1xf32> to vector<1x1xf32>
      %c0_27 = arith.constant 0 : index
      %c0_28 = arith.constant 0 : index
      %c0_29 = arith.constant 0 : index
      %50 = vector.load %arg6[%c0_27, %c0_28, %c0_29] : memref<1x1x1xf32, #tpu.memory_space<vmem>>, vector<1x1x1xf32>
      %51 = vector.shape_cast %50 : vector<1x1x1xf32> to vector<1x1xf32>
      %52 = vector.shape_cast %49 : vector<1x1xf32> to vector<1x1x1xf32>
      tpu.vector_store %arg6[%c0_27, %c0_28, %c0_29], %52 {strides = array<i32>} : memref<1x1x1xf32, #tpu.memory_space<vmem>>, vector<1x1x1xf32>,
    } else {
    }
    return
  }
  func.func @transform_0(%arg0: i32, %arg1: i32) -> (i32, i32) {
    %c0_i32 = arith.constant 0 : i32
    %c0_i32_0 = arith.constant 0 : i32
    return %arg0, %c0_i32 : i32, i32
  }
  func.func @transform_1(%arg0: i32, %arg1: i32) -> (i32, i32) {
    %c0_i32 = arith.constant 0 : i32
    %c0_i32_0 = arith.constant 0 : i32
    return %arg0, %c0_i32 : i32, i32
  }
  func.func @transform_2(%arg0: i32, %arg1: i32) -> (i32, i32) {
    %c0_i32 = arith.constant 0 : i32
    %c0_i32_0 = arith.constant 0 : i32
    return %arg1, %c0_i32 : i32, i32
  }
  func.func @transform_3(%arg0: i32, %arg1: i32) -> (i32, i32) {
    %c0_i32 = arith.constant 0 : i32
    %c0_i32_0 = arith.constant 0 : i32
    return %arg1, %c0_i32 : i32, i32
  }
  func.func @transform_4(%arg0: i32, %arg1: i32) -> (i32, i32, i32) {
    %c0_i32 = arith.constant 0 : i32
    %c0_i32_0 = arith.constant 0 : i32
    %c0_i32_1 = arith.constant 0 : i32
    return %arg0, %c0_i32, %c0_i32_0 : i32, i32, i32
  }
}

</mosaic_0001>

<llo_original>
// kernel: tpu_custom_call.1
$region0: #{tpu_custom_call.1}
  #allocation0 [shape = 'u32[]', space=smem, size = 0x4, offset = 0x4, fixed_abs, tag = 'smem constant byte address 0x4 - core index']
  #allocation1 [shape = 'u32[144,128]{1,0:T(1,128)}', space=vmem, size = 0x12000, scoped, tag = 'internal scratch']
  #allocation2 [shape = 'f32[8,1]{1,0:T(8,128)}', space=vmem, size = 0x1000, scoped, tag = 'scratch operand']
  #allocation3 [shape = 'f32[8,1]{1,0:T(8,128)}', space=vmem, size = 0x1000, scoped, tag = 'scratch operand']
  %s0 = inlined_call_operand.hbm [shape: f32[8,16], index: 0, kind: input, shape index: {}]
  %s1 = inlined_call_operand.hbm [shape: f32[8,16], index: 1, kind: input, shape index: {}]
  %s2 = inlined_call_operand.hbm [shape: f32[8,16], index: 2, kind: input, shape index: {}]
  %s3 = inlined_call_operand.vmem [shape: f32[8,16], index: 3, kind: input, shape index: {}]
  %s4 = inlined_call_operand.hbm [shape: f32[1,1,1], index: 4, kind: output, shape index: {}]
  %s5 = sld [smem:[#allocation0]]
  $region46: #{tpu_custom_call.1} parent=0
    _
  %s7 = ssub.s32 1, %s5
  %s8 = scalar_select 0, %s7, %s5
  $region1: #{tpu_custom_call.1} parent=0
    #allocation4 [shape = 'u8[4096]{0}', space=vmem, size = 0x1000, scoped, tag = 'input window, operand 0, single buffered']
    #allocation5 [shape = 's32[1]{0}', space=sflag, size = 0x4, scoped, tag = 'scoped memory for tpu_custom_call.1']
    #allocation6 [shape = 's32[1]{0}', space=sflag, size = 0x4, scoped, tag = 'scoped memory for tpu_custom_call.1']
    #allocation7 [shape = 'u8[4096]{0}', space=vmem, size = 0x1000, scoped, tag = 'input window, operand 1, single buffered']
    #allocation8 [shape = 's32[1]{0}', space=sflag, size = 0x4, scoped, tag = 'scoped memory for tpu_custom_call.1']
    #allocation9 [shape = 'u8[4096]{0}', space=vmem, size = 0x1000, scoped, tag = 'input window, operand 2, single buffered']
    #allocation10 [shape = 'u8[512]{0}', space=vmem, size = 0x400, scoped, tag = 'output window, operand 0, single buffered']
    %9 = vsyncpa [#allocation5], 0
    %10 = vsyncpa [#allocation8], 0
    %11 = vsyncpa [#allocation6], 0
    // Predicated region
    $region2: #{tpu_custom_call.1} parent=1 // pred_check
      _
    $region3: #{tpu_custom_call.1} parent=1 // pred_check_branch
      %13 = sbr.rel (0) target = $region5
    $region4: #{tpu_custom_call.1} parent=1 // pred_region
      %s15 = ssub.s32 128, 128
      %16 = vsyncadd [#allocation5], %s15
      %s18 = sshll.u32 [#allocation4], 4
      %s19 = int_to_ptr.vmem [resolvable:$true] %s18
      %21 = dma.hbm_to_vmem [thread:$0]  %s0, 128, %s19, [#allocation5]
    $region5: #{tpu_custom_call.1} parent=1 // pred_fallthru
      _
    // Predicated region
    $region6: #{tpu_custom_call.1} parent=1 // pred_check
      _
    $region7: #{tpu_custom_call.1} parent=1 // pred_check_branch
      %23 = sbr.rel (0) target = $region9
    $region8: #{tpu_custom_call.1} parent=1 // pred_region
      %s25 = ssub.s32 128, 128
      %26 = vsyncadd [#allocation8], %s25
      %s28 = sshll.u32 [#allocation7], 4
      %s29 = int_to_ptr.vmem [resolvable:$true] %s28
      %31 = dma.hbm_to_vmem [thread:$0]  %s1, 128, %s29, [#allocation8]
    $region9: #{tpu_custom_call.1} parent=1 // pred_fallthru
      _
    // Predicated region
    $region10: #{tpu_custom_call.1} parent=1 // pred_check
      _
    $region11: #{tpu_custom_call.1} parent=1 // pred_check_branch
      %33 = sbr.rel (0) target = $region13
    $region12: #{tpu_custom_call.1} parent=1 // pred_region
      %s35 = ssub.s32 128, 128
      %36 = vsyncadd [#allocation8], %s35
      %s38 = sshll.u32 [#allocation9], 4
      %s39 = int_to_ptr.vmem [resolvable:$true] %s38
      %41 = dma.hbm_to_vmem [thread:$0]  %s2, 128, %s39, [#allocation8]
    $region13: #{tpu_custom_call.1} parent=1 // pred_fallthru
      _
    // Predicated region
    $region14: #{tpu_custom_call.1} parent=1 // pred_check
      _
    $region15: #{tpu_custom_call.1} parent=1 // pred_check_branch
      %43 = sbr.rel (0) target = $region17
    $region16: #{tpu_custom_call.1} parent=1 // pred_region
      _
    $region17: #{tpu_custom_call.1} parent=1 // pred_fallthru
      _
    // Predicated region
    $region18: #{tpu_custom_call.1} parent=1 // pred_check
      _
    $region19: #{tpu_custom_call.1} parent=1 // pred_check_branch
      %45 = sbr.rel (0) target = $region21
    $region20: #{tpu_custom_call.1} parent=1 // pred_region
      %46 = dma.done [#allocation5], 128
    $region21: #{tpu_custom_call.1} parent=1 // pred_fallthru
      _
    // Predicated region
    $region22: #{tpu_custom_call.1} parent=1 // pred_check
      _
    $region23: #{tpu_custom_call.1} parent=1 // pred_check_branch
      %48 = sbr.rel (0) target = $region25
    $region24: #{tpu_custom_call.1} parent=1 // pred_region
      %49 = dma.done [#allocation8], 128
    $region25: #{tpu_custom_call.1} parent=1 // pred_fallthru
      _
    // Predicated region
    $region26: #{tpu_custom_call.1} parent=1 // pred_check
      _
    $region27: #{tpu_custom_call.1} parent=1 // pred_check_branch
      %51 = sbr.rel (0) target = $region29
    $region28: #{tpu_custom_call.1} parent=1 // pred_region
      %52 = dma.done [#allocation8], 128
    $region29: #{tpu_custom_call.1} parent=1 // pred_fallthru
      _
    %p53 = scmp.eq.s32.totalorder 0, 0
    // Predicated region
    $region30: #{tpu_custom_call.1} parent=1 // pred_check
      %p54 = pneg %p53
    $region31: #{tpu_custom_call.1} parent=1 // pred_check_branch
      %56 = sbr.rel (%p54) target = $region33
    $region32: #{tpu_custom_call.1} parent=1 // pred_region
      %vm57 = vcmask 7168
      %58 = vst.msk [vmem:[#allocation2] sm:$0xff] %vm57, 0.0
      %59 = vst.msk [vmem:[#allocation3] sm:$0xff] %vm57, 0.0
    $region33: #{tpu_custom_call.1} parent=1 // pred_fallthru
      _
    %v60 = vld [vmem:[#allocation4] sm:$0xff]
    %v61 = vld [vmem:[#allocation7] sm:$0xff]
    %v62 = vld [vmem:[#allocation9] sm:$0xff]
    %v63 = vld [vmem:[%s3] sm:$0xff]
    %v64 = vsub.f32 %v60, %v61
    %v65 = vand.u32 2147483647, %v64
    %v66 = vsub.f32 %v62, %v63
    %v67 = vand.u32 2147483647, %v66
    %69 = vrot.lane.b32.xlu0 %v67, 113
    %v70 = vpop.permute.xlu0 %69
    %72 = vxpose.xlu0.b32.start [1/16] %v70, 128
    %73 = vxpose.xlu0.b32.cont [2/16] 0.0, 128
    %74 = vxpose.xlu0.b32.cont [3/16] 0.0, 128
    %75 = vxpose.xlu0.b32.cont [4/16] 0.0, 128
    %76 = vxpose.xlu0.b32.cont [5/16] 0.0, 128
    %77 = vxpose.xlu0.b32.cont [6/16] 0.0, 128
    %78 = vxpose.xlu0.b32.cont [7/16] 0.0, 128
    %79 = vxpose.xlu0.b32.cont [8/16] 0.0, 128
    %80 = vxpose.xlu0.b32.cont [9/16] 0.0, 128
    %81 = vxpose.xlu0.b32.cont [10/16] 0.0, 128
    %82 = vxpose.xlu0.b32.cont [11/16] 0.0, 128
    %83 = vxpose.xlu0.b32.cont [12/16] 0.0, 128
    %84 = vxpose.xlu0.b32.cont [13/16] 0.0, 128
    %85 = vxpose.xlu0.b32.cont [14/16] 0.0, 128
    %86 = vxpose.xlu0.b32.cont [15/16] 0.0, 128
    %87 = vxpose.xlu0.b32.end [16/16] 0.0, 128
    %v88 = vpop.trf.xlu0
    %v89 = vpop.trf.xlu0
    %v90 = vpop.trf.xlu0
    %v91 = vpop.trf.xlu0
    %v92 = vpop.trf.xlu0
    %v93 = vpop.trf.xlu0
    %v94 = vpop.trf.xlu0
    %v95 = vpop.trf.xlu0
    %v96 = vpop.trf.xlu0
    %v97 = vpop.trf.xlu0
    %v98 = vpop.trf.xlu0
    %v99 = vpop.trf.xlu0
    %v100 = vpop.trf.xlu0
    %v101 = vpop.trf.xlu0
    %v102 = vpop.trf.xlu0
    %v103 = vpop.trf.xlu0
    %v104 = vlaneseq
    %v105 = vshrl.u32 %v104, 7
    %v106 = vsub.s32 0, %v105
    %v107 = vrot.slane %v88, %v106
    %109 = vset.pattern.permute.xlu0 15
    %110 = vperm.xlu0 %109, %v65
    %v111 = vpop.permute.xlu0 %110
    %vm113 = vcmp.lt.f32.partialorder %v107, %v111
    %v114 = vsel %vm113, 1, 0
    %v115 = vcvt.s32.f32 %v114
    %vm116 = vcmp.le.f32.partialorder %v107, %v111
    %v117 = vsel %vm116, 1, 0
    %v118 = vcvt.s32.f32 %v117
    %v119 = vld [vmem:[#allocation2] sm:$0xff]
    %vm120 = vcmask 64512
    %v121 = vsel %vm120, %v115, 0.0
    %122 = vadd.xlane.f32.xlu0 %v121
    %v123 = vpop.xlane.xlu0 %122
    %v124 = vadd.f32 %v119, %v123
    %vm125 = vcmask 7168
    %126 = vst.msk [vmem:[#allocation2] sm:$0xff] %vm125, %v124
    %v127 = vld [vmem:[#allocation3] sm:$0xff]
    %v128 = vsel %vm120, %v118, 0.0
    %129 = vadd.xlane.f32.xlu0 %v128
    %v130 = vpop.xlane.xlu0 %129
    %v131 = vadd.f32 %v127, %v130
    %132 = vst.msk [vmem:[#allocation3] sm:$0xff] %vm125, %v131
    // Predicated region
    $region34: #{tpu_custom_call.1} parent=1 // pred_check
      %p133 = pneg %p53
    $region35: #{tpu_custom_call.1} parent=1 // pred_check_branch
      %135 = sbr.rel (%p133) target = $region37
    $region36: #{tpu_custom_call.1} parent=1 // pred_region
      %v136 = vld [vmem:[#allocation2] sm:$0xff]
      %vm137 = vcmp.le.f32.partialorder %v136, 3.0
      %v138 = vld [vmem:[#allocation3] sm:$0xff]
      %vm139 = vcmp.gt.f32.partialorder %v138, 3.0
      %vm140 = vmand %vm137, %vm139
      %141 = vrot.lane.b32.xlu0 %v65, 113
      %v142 = vpop.permute.xlu0 %141
      %v144 = vsel %vm140, %v142, -inf
      %v145 = vsel %vm125, %v144, -inf
      %v146 = vrot.slane %v145, 4
      %v147 = vmax.f32 %v145, %v146
      %v148 = vrot.slane %v147, 2
      %v149 = vmax.f32 %v147, %v148
      %v150 = vrot.slane %v149, 1
      %v151 = vmax.f32 %v149, %v150
      %vm152 = vcmask 0
      %153 = vst.msk [vmem:[#allocation10] sm:$0x1] %vm152, %v151
    $region37: #{tpu_custom_call.1} parent=1 // pred_fallthru
      _
    // Predicated region
    $region38: #{tpu_custom_call.1} parent=1 // pred_check
      _
    $region39: #{tpu_custom_call.1} parent=1 // pred_check_branch
      %155 = sbr.rel (0) target = $region41
    $region40: #{tpu_custom_call.1} parent=1 // pred_region
      %s157 = ssub.s32 16, 16
      %158 = vsyncadd [#allocation6], %s157
      %s160 = sshll.u32 [#allocation10], 4
      %s161 = int_to_ptr.vmem [resolvable:$true] %s160
      %163 = dma.vmem_to_hbm [thread:$0]  %s161, 16, %s4, [#allocation6]
    $region41: #{tpu_custom_call.1} parent=1 // pred_fallthru
      _
    // Predicated region
    $region42: #{tpu_custom_call.1} parent=1 // pred_check
      _
    $region43: #{tpu_custom_call.1} parent=1 // pred_check_branch
      %165 = sbr.rel (0) target = $region45
    $region44: #{tpu_custom_call.1} parent=1 // pred_region
      %166 = dma.done [#allocation6], 16
    $region45: #{tpu_custom_call.1} parent=1 // pred_fallthru
      _
    %167 = vsyncpa [#allocation5], 1
    %168 = vsyncpa [#allocation8], 1
    %169 = vsyncpa [#allocation6], 1

</llo_original>
